<compile_context>
chip_gen: v7x
topology: tpu7x:2x2x1
jax: 0.10.0
libtpu: 0.0.40
codegen_flags: <defaults>
</compile_context>

<pallas_src>
import jax
import jax.numpy as jnp
from jax.experimental import pallas as pl


def _identity_kernel(x_ref, o_ref):
    # o_ref is aliased to x_ref's HBM buffer: the data is already in place,
    # so there is nothing to load, compute, or store.
    del x_ref, o_ref


def identity_pallas(x: jax.Array) -> jax.Array:
    """Pallas TPU Identity: forward(x) -> x with no DMA, no compute, no grid.

    Zero data movement only holds when the caller donates `x`; otherwise XLA
    inserts one defensive copy (the minimum possible: one HBM read + write).
    Prefer `identity` (plain return) inside larger jitted programs.
    """
    return pl.pallas_call(
        _identity_kernel,
        out_shape=jax.ShapeDtypeStruct(x.shape, x.dtype),
        in_specs=[pl.BlockSpec(memory_space=pl.ANY)],
        out_specs=pl.BlockSpec(memory_space=pl.ANY),
        input_output_aliases={0: 0},  # output 0 reuses input 0's buffer
        cost_estimate=pl.CostEstimate(flops=0, transcendentals=0,
                                      bytes_accessed=0),
    )(x)


def identity(x: jax.Array, *, use_pallas: bool = False) -> jax.Array:
    """Identity.forward(x) -> x.

    Default path bypasses pallas_call entirely (no launch overhead, no fusion
    barrier, no alias-forced defensive copy). Set use_pallas=True only for
    kernel-test / benchmark parity with other Pallas ops.
    """
    if use_pallas:
        return identity_pallas(x)
    return x


if __name__ == "__main__":
    key = jax.random.PRNGKey(0)
    x = jax.random.normal(key, (2, 4, 16, 16), dtype=jnp.float32)  # NCHW

    # Path 1: default (plain pass-through).
    y0 = identity(x)
    jax.block_until_ready(y0)
    assert y0.shape == x.shape and y0.dtype == x.dtype
    assert bool(jnp.all(y0 == x))

    # Path 2: Pallas no-op custom call, non-donated input (XLA inserts one
    # defensive copy; result must still match bit-for-bit).
    y1 = identity(x, use_pallas=True)
    jax.block_until_ready(y1)
    assert y1.shape == x.shape and y1.dtype == x.dtype
    assert bool(jnp.all(y1 == x))

    # Path 3: Pallas path with a donated input (the intended zero-copy route).
    x_donate = x + 0.0  # fresh buffer we are free to donate
    jitted = jax.jit(identity_pallas, donate_argnums=0)
    y2 = jitted(x_donate)
    jax.block_until_ready(y2)
    assert y2.shape == x.shape and y2.dtype == x.dtype
    assert bool(jnp.all(y2 == x))

    print("KERNEL_OK")
</pallas_src>

<mosaic_0001>
module attributes {stable_mosaic.version = 11 : i64} {
  func.func @_identity_kernel(%arg0: memref<2x4x16x16xf32, #tpu.memory_space<any>>, %arg1: memref<2x4x16x16xf32, #tpu.memory_space<any>>) attributes {dimension_semantics = [], scalar_prefetch = 0 : i64, scratch_operands = 0 : i64, tpu.core_type = #tpu.core_type<tc>} {
    return
  }
}

</mosaic_0001>

<llo_original>
// kernel: tpu_custom_call.1
$region0: #{tpu_custom_call.1}
  #allocation0 [shape = 'u32[]', space=smem, size = 0x4, offset = 0x4, fixed_abs, tag = 'smem constant byte address 0x4 - core index']
  #allocation1 [shape = 'u32[144,128]{1,0:T(1,128)}', space=vmem, size = 0x12000, scoped, tag = 'internal scratch']
  %s0 = inlined_call_operand.hbm [shape: f32[2,4,16,16], index: 0, kind: input, shape index: {}, may-alias: {0,1}]
  %s1 = inlined_call_operand.hbm [shape: f32[2,4,16,16], index: 1, kind: output, shape index: {}, may-alias: {0,1}]
  %s2 = sld [smem:[#allocation0]]
  $region2: #{tpu_custom_call.1} parent=0
    _
  %s4 = ssub.s32 1, %s2
  %s5 = scalar_select 0, %s4, %s2

</llo_original>
